<compile_context>
chip_gen: v5e
topology: v5e:2x2
jax: 0.10.0
libtpu: 0.0.40
codegen_flags: <defaults>
</compile_context>

<pallas_src>
import functools

import jax
import jax.numpy as jnp
from jax.experimental import pallas as pl
from jax.experimental.pallas import tpu as pltpu

_LANES = 128
_SUBLANES = 8
_EPS = 1e-12


def _tpu_config():
    """(row-tile cap, vmem_limit_bytes, megacore grid split) per TPU generation."""
    try:
        vmem = getattr(pltpu.get_tpu_info(), "vmem_capacity_bytes", None)
    except Exception:  # not on TPU at trace time / API shape differs
        vmem = None
    if vmem is None:                      # unknown: conservative & portable
        return 2048, 32 * 1024 * 1024, 1
    if vmem <= 80 * 1024 * 1024:          # v7x-class: 64 MiB per TC, 2 TCs/chip
        return 4096, 48 * 1024 * 1024, 2
    return 8192, 96 * 1024 * 1024, 1      # v5e / v6e: 128 MiB VMEM, single TC


_TM_CAP, _VMEM_LIMIT, _NCORES = _tpu_config()


def _round_up(x, m):
    return (x + m - 1) // m * m


def _compiler_params(sem):
    return pltpu.CompilerParams(dimension_semantics=sem,
                                vmem_limit_bytes=_VMEM_LIMIT)


# ----------------------------------------------------------------------------
# Layout helpers (no-copy reshapes in the common case)
# ----------------------------------------------------------------------------
def _to_slab(x):
    """Flatten to a lane-dense (rows, 128) slab.

    Pure no-copy reshape when x.size % 128 == 0 (the usual NCHW case).
    Returns (slab, true_element_count).
    """
    n = x.size
    if n % _LANES == 0:
        return x.reshape(-1, _LANES), n
    # TODO(synk): rare shapes with numel % 128 != 0 still pay one padded-copy
    # HBM pass; a masked 1-D tail kernel would remove it.
    rem = (-n) % (_SUBLANES * _LANES)
    flat = jnp.pad(x.reshape(-1), (0, rem))
    return flat.reshape(-1, _LANES), n


def _to_sample_slab(x, n_samples):
    """Reshape to (N, rows_per_sample, 128); tail-pad per sample only if needed."""
    x2 = x.reshape(n_samples, -1)
    rem = (-x2.shape[1]) % _LANES
    if rem:
        x2 = jnp.pad(x2, ((0, 0), (0, rem)))
    return x2.reshape(n_samples, -1, _LANES)


def _pick_channel_pack(c, rw, cap):
    """Channels packed per block for the compact-weight layout (or None)."""
    if c * rw <= cap:
        return c                           # whole sample per step (full-dim block)
    kmax = max(1, cap // rw)
    for k in range(min(c, kmax), 0, -1):
        if c % k == 0 and (k * rw) % _SUBLANES == 0:
            return k
    return None


def _compact_weight_plan(pred_shape, weight_shape, cap):
    """Plan for a (N,1,*spatial) weight applied to (N,C,*spatial) pred, or None."""
    if len(pred_shape) < 3 or len(weight_shape) != len(pred_shape):
        return None
    n, c = pred_shape[0], pred_shape[1]
    if (weight_shape[0] != n or weight_shape[1] != 1
            or tuple(weight_shape[2:]) != tuple(pred_shape[2:])):
        return None
    hw = 1
    for d in pred_shape[2:]:
        hw *= d
    if hw % _LANES != 0:
        return None
    rw = hw // _LANES
    if rw > cap:
        return None
    k = _pick_channel_pack(c, rw, cap)
    if k is None:
        return None
    return n, c, rw, k


# ----------------------------------------------------------------------------
# In-kernel accumulation helpers
# ----------------------------------------------------------------------------
def _accumulate(acc_ref, x):
    """Accumulate a (rows, 128) f32 block into an (8, 128) f32 accumulator."""
    r = x.shape[0]
    if r % _SUBLANES == 0:
        acc_ref[...] += x.reshape(r // _SUBLANES, _SUBLANES, _LANES).sum(axis=0)
    else:
        acc_ref[0:1, :] = acc_ref[0:1, :] + jnp.sum(x, axis=0, keepdims=True)


def _gated_accumulate(acc_refs, vals, *, exact, start, tm, rows):
    """Accumulate; only boundary / duplicated steps pay the masking cost."""
    if exact:
        for a, v in zip(acc_refs, vals):
            _accumulate(a, v)
        return

    @pl.when(start + tm <= rows)          # fully valid block: no mask
    def _():
        for a, v in zip(acc_refs, vals):
            _accumulate(a, v)

    @pl.when(jnp.logical_and(start < rows, start + tm > rows))   # boundary block
    def _():
        for a, v in zip(acc_refs, vals):
            mask = (jax.lax.broadcasted_iota(jnp.int32, v.shape, 0) + start) < rows
            _accumulate(a, jnp.where(mask, v, 0.0))
    # start >= rows (duplicated clamp step on the core split) accumulates nothing.


# ----------------------------------------------------------------------------
# Kernel bodies
# ----------------------------------------------------------------------------
def _sqdiff_kernel(p_ref, t_ref, o_ref):
    d = p_ref[...].astype(jnp.float32) - t_ref[...].astype(jnp.float32)
    o_ref[...] = (d * d).astype(o_ref.dtype)


def _wsqdiff_kernel(p_ref, t_ref, w_ref, o_ref):
    d = p_ref[...].astype(jnp.float32) - t_ref[...].astype(jnp.float32)
    o_ref[...] = (w_ref[...].astype(jnp.float32) * d * d).astype(o_ref.dtype)


def _apply_compact_weight(sq, w, reps):
    """weight*(p-t)^2 where w covers 1 channel and sq covers `reps` channels."""
    if reps == 1:
        return w * sq
    wl = sq.reshape(reps, w.shape[0], _LANES) * w[jnp.newaxis, :, :]
    return wl.reshape(sq.shape[0], _LANES)


def _wsqdiff_compact_kernel(p_ref, t_ref, w_ref, o_ref, *, reps):
    d = p_ref[...].astype(jnp.float32) - t_ref[...].astype(jnp.float32)
    w = w_ref[...].astype(jnp.float32)
    o_ref[...] = _apply_compact_weight(d * d, w, reps).astype(o_ref.dtype)


def _sum_reduce_kernel(p_ref, t_ref, o_ref, acc_ref, *, tm, spc, rows, exact):
    """Global sum((p-t)^2); per-core scalar partial written at the last step."""
    i = pl.program_id(1)

    @pl.when(i == 0)
    def _():
        acc_ref[...] = jnp.zeros_like(acc_ref)

    d = p_ref[...].astype(jnp.float32) - t_ref[...].astype(jnp.float32)
    start = (pl.program_id(0) * spc + i) * tm
    _gated_accumulate((acc_ref,), (d * d,), exact=exact, start=start, tm=tm,
                      rows=rows)

    @pl.when(i == pl.num_programs(1) - 1)
    def _():
        o_ref[...] = jnp.sum(acc_ref[...], keepdims=True)


def _wsum_reduce_kernel(p_ref, t_ref, w_ref, wl_out, ws_out, wl_acc, w_acc, *,
                        tm, spc, rows, exact):
    """Global (sum(w*(p-t)^2), sum(w)) for a full-shape weight slab."""
    i = pl.program_id(1)

    @pl.when(i == 0)
    def _():
        wl_acc[...] = jnp.zeros_like(wl_acc)
        w_acc[...] = jnp.zeros_like(w_acc)

    d = p_ref[...].astype(jnp.float32) - t_ref[...].astype(jnp.float32)
    w = w_ref[...].astype(jnp.float32)
    start = (pl.program_id(0) * spc + i) * tm
    _gated_accumulate((wl_acc, w_acc), (w * d * d, w), exact=exact, start=start,
                      tm=tm, rows=rows)

    @pl.when(i == pl.num_programs(1) - 1)
    def _():
        wl_out[...] = jnp.sum(wl_acc[...], keepdims=True)
        ws_out[...] = jnp.sum(w_acc[...], keepdims=True)


def _wsum_sample_kernel(p_ref, t_ref, w_ref, wl_out, ws_out, wl_acc, w_acc, *,
                        reps, exact, tm, rows):
    """Per-sample (sum(w*(p-t)^2), sum(w)); compact weight via in-register bcast."""
    i = pl.program_id(1)

    @pl.when(i == 0)
    def _():
        wl_acc[...] = jnp.zeros_like(wl_acc)
        w_acc[...] = jnp.zeros_like(w_acc)

    d = p_ref[...].astype(jnp.float32) - t_ref[...].astype(jnp.float32)
    w = w_ref[...].astype(jnp.float32)
    wl = _apply_compact_weight(d * d, w, reps)
    wsum_val = w if reps == 1 else w * reps     # each compact element counts reps x
    start = i * tm
    _gated_accumulate((wl_acc, w_acc), (wl, wsum_val), exact=exact, start=start,
                      tm=tm, rows=rows)

    @pl.when(i == pl.num_programs(1) - 1)
    def _():
        wl_out[...] = jnp.sum(wl_acc[...], keepdims=True)
        ws_out[...] = jnp.sum(w_acc[...], keepdims=True)


# ----------------------------------------------------------------------------
# pallas_call wrappers
# ----------------------------------------------------------------------------
def _pallas_sqdiff(pred, target, weight=None):
    """Elementwise [weight *] (pred - target)^2 on the flat lane-dense slab."""
    p, n = _to_slab(pred)
    t, _ = _to_slab(target)
    rows = p.shape[0]
    tm = min(_TM_CAP, rows)
    # Keep both v7x TensorCores busy on short tensors.
    if _NCORES > 1 and rows > _SUBLANES and pl.cdiv(rows, tm) < _NCORES:
        tm = _round_up(pl.cdiv(rows, _NCORES), _SUBLANES)

    spec = pl.BlockSpec((tm, _LANES), lambda i: (i, 0))
    args = [p, t]
    kernel = _sqdiff_kernel
    if weight is not None:
        w, _ = _to_slab(weight)
        args.append(w)
        kernel = _wsqdiff_kernel

    out = pl.pallas_call(
        kernel,
        out_shape=jax.ShapeDtypeStruct((rows, _LANES), pred.dtype),
        grid_spec=pltpu.PrefetchScalarGridSpec(
            num_scalar_prefetch=0,
            grid=(pl.cdiv(rows, tm),),
            in_specs=[spec] * len(args),
            out_specs=spec),
        compiler_params=_compiler_params(("parallel",)),
    )(*args)

    if rows * _LANES == n:
        return out.reshape(pred.shape)          # pure reshape, no copy
    return out.reshape(-1)[:n].reshape(pred.shape)


def _pallas_wsqdiff_compact(pred, target, weight, plan):
    """Elementwise weight*(p-t)^2 without materializing the channel broadcast."""
    n, c, rw, k = plan
    rs = c * rw
    t_r = k * rw
    tiles = c // k
    p = pred.reshape(n, rs, _LANES)
    t = target.reshape(n, rs, _LANES)
    w = weight.reshape(n, rw, _LANES)

    x_spec = pl.BlockSpec((None, t_r, _LANES), lambda s, i: (s, i, 0))
    w_spec = pl.BlockSpec((None, rw, _LANES), lambda s, i: (s, 0, 0))

    out = pl.pallas_call(
        functools.partial(_wsqdiff_compact_kernel, reps=k),
        out_shape=jax.ShapeDtypeStruct((n, rs, _LANES), pred.dtype),
        grid_spec=pltpu.PrefetchScalarGridSpec(
            num_scalar_prefetch=0,
            grid=(n, tiles),
            in_specs=[x_spec, x_spec, w_spec],
            out_specs=x_spec),
        compiler_params=_compiler_params(("parallel", "parallel")),
    )(p, t, w)
    return out.reshape(pred.shape)


def _pallas_global_reduce(pred, target, weight=None):
    """Scalar sum((p-t)^2) or (sum(w*(p-t)^2), sum(w)) over the flat slab."""
    p, _ = _to_slab(pred)
    t, _ = _to_slab(target)
    args = [p, t]
    if weight is not None:
        w, _ = _to_slab(weight)
        args.append(w)

    rows = p.shape[0]
    tm = min(_TM_CAP, rows)
    total = pl.cdiv(rows, tm)
    ncores = min(_NCORES, total)
    spc = pl.cdiv(total, ncores)
    exact = (ncores * spc * tm == rows)

    in_spec = pl.BlockSpec(
        (tm, _LANES), lambda c, i: (jnp.minimum(c * spc + i, total - 1), 0))
    out_spec = pl.BlockSpec((None, 1, 1), lambda c, i: (c, 0, 0))
    out_shape = jax.ShapeDtypeStruct((ncores, 1, 1), jnp.float32)
    acc = pltpu.VMEM((_SUBLANES, _LANES), jnp.float32)

    if weight is None:
        kern = functools.partial(_sum_reduce_kernel, tm=tm, spc=spc, rows=rows,
                                 exact=exact)
        out_shapes, out_specs, scratch = out_shape, out_spec, [acc]
    else:
        kern = functools.partial(_wsum_reduce_kernel, tm=tm, spc=spc, rows=rows,
                                 exact=exact)
        out_shapes, out_specs = (out_shape, out_shape), (out_spec, out_spec)
        scratch = [pltpu.VMEM((_SUBLANES, _LANES), jnp.float32),
                   pltpu.VMEM((_SUBLANES, _LANES), jnp.float32)]

    res = pl.pallas_call(
        kern,
        out_shape=out_shapes,
        grid_spec=pltpu.PrefetchScalarGridSpec(
            num_scalar_prefetch=0,
            grid=(ncores, spc),
            in_specs=[in_spec] * len(args),
            out_specs=out_specs,
            scratch_shapes=scratch),
        compiler_params=_compiler_params(("parallel", "arbitrary")),
    )(*args)

    if weight is None:
        return jnp.sum(res)
    return jnp.sum(res[0]), jnp.sum(res[1])


def _pallas_per_sample_weighted_sums(pred, target, weight, plan):
    """Per-sample (sum(w*(p-t)^2), sum(w)) as (N,) f32 vectors."""
    n = pred.shape[0]
    if plan is not None:                      # compact (N,1,H,W) weight path
        _, c, rw, k = plan
        rs = c * rw
        p = pred.reshape(n, rs, _LANES)
        t = target.reshape(n, rs, _LANES)
        w = weight.reshape(n, rw, _LANES)
        t_r, tiles, reps, exact = k * rw, c // k, k, True
        w_rows, w_idx = rw, (lambda s, i: (s, 0, 0))
    else:                                     # full-shape weight
        p = _to_sample_slab(pred, n)
        t = _to_sample_slab(target, n)
        w = _to_sample_slab(weight, n)
        rs = p.shape[1]
        t_r = min(_TM_CAP, rs)
        tiles = pl.cdiv(rs, t_r)
        reps = 1
        exact = (tiles * t_r == rs)
        w_rows, w_idx = t_r, (lambda s, i: (s, i, 0))
    # TODO(synk): pack several samples per grid step when rows-per-sample is
    # tiny (sample_wise with very small C*H*W) to avoid overhead-bound steps.

    x_spec = pl.BlockSpec((None, t_r, _LANES), lambda s, i: (s, i, 0))
    w_spec = pl.BlockSpec((None, w_rows, _LANES), w_idx)
    out_spec = pl.BlockSpec((None, 1, 1), lambda s, i: (s, 0, 0))
    out_shape = jax.ShapeDtypeStruct((n, 1, 1), jnp.float32)

    kern = functools.partial(_wsum_sample_kernel, reps=reps, exact=exact,
                             tm=t_r, rows=(p.shape[1]))
    wl, ws = pl.pallas_call(
        kern,
        out_shape=(out_shape, out_shape),
        grid_spec=pltpu.PrefetchScalarGridSpec(
            num_scalar_prefetch=0,
            grid=(n, tiles),
            in_specs=[x_spec, x_spec, w_spec],
            out_specs=(out_spec, out_spec),
            scratch_shapes=[pltpu.VMEM((_SUBLANES, _LANES), jnp.float32),
                            pltpu.VMEM((_SUBLANES, _LANES), jnp.float32)]),
        compiler_params=_compiler_params(("parallel", "arbitrary")),
    )(p, t, w)
    return wl[:, 0, 0], ws[:, 0, 0]


# ----------------------------------------------------------------------------
# MSELoss module equivalent
# ----------------------------------------------------------------------------
class MSELoss:
    """JAX/Pallas equivalent of the PyTorch MSELoss (masked_loss + F.mse_loss)."""

    def __init__(self, loss_weight=1.0, reduction='mean', sample_wise=False):
        if reduction not in ['none', 'mean', 'sum']:
            raise ValueError(f'Unsupported reduction mode: {reduction}.')
        self.loss_weight = loss_weight
        self.reduction = reduction
        self.sample_wise = sample_wise

    def __call__(self, pred, target, weight=None):
        if weight is None:
            if self.reduction == 'none':
                return self.loss_weight * _pallas_sqdiff(pred, target)
            s = _pallas_global_reduce(pred, target)
            if self.reduction == 'mean':
                s = s / jnp.float32(pred.size)
            return (self.loss_weight * s).astype(pred.dtype)

        plan = None
        if weight.shape != pred.shape:
            plan = _compact_weight_plan(pred.shape, weight.shape, _TM_CAP)
            if plan is None:
                # TODO(synk): unusual weight shapes still materialize the
                # broadcast; only (N,1,*spatial) with HW % 128 == 0 is compact.
                weight = jnp.broadcast_to(weight, pred.shape)

        if self.reduction == 'none':
            if plan is not None:
                return self.loss_weight * _pallas_wsqdiff_compact(
                    pred, target, weight, plan)
            return self.loss_weight * _pallas_sqdiff(pred, target, weight)

        if self.reduction == 'sum':
            if plan is not None:
                wl_s, _ = _pallas_per_sample_weighted_sums(pred, target, weight, plan)
                s = jnp.sum(wl_s)
            else:
                s, _ = _pallas_global_reduce(pred, target, weight)
            return (self.loss_weight * s).astype(pred.dtype)

        # reduction == 'mean'
        if self.sample_wise:
            wl_s, w_s = _pallas_per_sample_weighted_sums(pred, target, weight, plan)
            loss = jnp.sum(wl_s / (w_s + _EPS)) / pred.shape[0]
        else:
            if plan is not None:
                wl_s, w_s = _pallas_per_sample_weighted_sums(pred, target, weight, plan)
                wl, ws = jnp.sum(wl_s), jnp.sum(w_s)
            else:
                wl, ws = _pallas_global_reduce(pred, target, weight)
            loss = wl / (ws + _EPS * pred.size)        # matches sum(weight + eps)
        return (self.loss_weight * loss).astype(pred.dtype)

    forward = __call__


# ----------------------------------------------------------------------------
# Reference (pure JAX, mirrors the torch masked_loss semantics) + tests
# ----------------------------------------------------------------------------
def _ref_mse_loss(pred, target, weight=None, reduction='mean',
                  sample_wise=False, loss_weight=1.0):
    loss = (pred.astype(jnp.float32) - target.astype(jnp.float32)) ** 2
    w = None
    if weight is not None:
        w = jnp.broadcast_to(weight, loss.shape).astype(jnp.float32)
        loss = loss * w
    if weight is None or reduction == 'sum':
        if reduction == 'mean':
            loss = jnp.mean(loss)
        elif reduction == 'sum':
            loss = jnp.sum(loss)
    elif reduction == 'mean':
        if sample_wise:
            wsum = jnp.sum(w.reshape(w.shape[0], -1), axis=1)
            lsum = jnp.sum(loss.reshape(loss.shape[0], -1), axis=1)
            loss = jnp.sum(lsum / (wsum + _EPS)) / loss.shape[0]
        else:
            loss = jnp.sum(loss) / jnp.sum(w + _EPS)
    return loss_weight * loss


if __name__ == "__main__":
    failures = []

    def check(name, got, want, rtol=1e-5, atol=1e-4):
        got = jax.block_until_ready(got)
        ok = bool(jnp.allclose(jnp.asarray(got, jnp.float32),
                               jnp.asarray(want, jnp.float32),
                               rtol=rtol, atol=atol))
        if not ok:
            failures.append(name)

    def run_suite(tag, shape, k, full=True):
        k1, k2, k3 = jax.random.split(k, 3)
        pred = jax.random.normal(k1, shape, dtype=jnp.float32)
        target = jax.random.normal(k2, shape, dtype=jnp.float32)
        wshape = (shape[0], 1) + shape[2:]
        weight = (jax.random.uniform(k3, wshape) > 0.5).astype(jnp.float32)
        weight_full = jnp.broadcast_to(weight, shape) + 0.0   # full-shape weight

        check(f"{tag}/mean", MSELoss(reduction='mean')(pred, target),
              _ref_mse_loss(pred, target, reduction='mean'))
        check(f"{tag}/sum", MSELoss(reduction='sum')(pred, target),
              _ref_mse_loss(pred, target, reduction='sum'))
        check(f"{tag}/none", MSELoss(reduction='none')(pred, target),
              _ref_mse_loss(pred, target, reduction='none'))
        check(f"{tag}/none_w",
              MSELoss(reduction='none')(pred, target, weight=weight),
              _ref_mse_loss(pred, target, weight=weight, reduction='none'))
        check(f"{tag}/mean_w",
              MSELoss(reduction='mean')(pred, target, weight=weight),
              _ref_mse_loss(pred, target, weight=weight, reduction='mean'))
        check(f"{tag}/mean_w_sw",
              MSELoss(reduction='mean', sample_wise=True)(pred, target, weight=weight),
              _ref_mse_loss(pred, target, weight=weight, reduction='mean',
                            sample_wise=True))
        check(f"{tag}/sum_wf",
              MSELoss(reduction='sum')(pred, target, weight=weight_full),
              _ref_mse_loss(pred, target, weight=weight_full, reduction='sum'))
        check(f"{tag}/mean_wf_sw",
              MSELoss(reduction='mean', sample_wise=True)(pred, target,
                                                          weight=weight_full),
              _ref_mse_loss(pred, target, weight=weight_full, reduction='mean',
                            sample_wise=True))
        if full:
            check(f"{tag}/sum_w",
                  MSELoss(reduction='sum')(pred, target, weight=weight),
                  _ref_mse_loss(pred, target, weight=weight, reduction='sum'))
            check(f"{tag}/none_wf",
                  MSELoss(reduction='none')(pred, target, weight=weight_full),
                  _ref_mse_loss(pred, target, weight=weight_full, reduction='none'))
            check(f"{tag}/mean_wf",
                  MSELoss(reduction='mean')(pred, target, weight=weight_full),
                  _ref_mse_loss(pred, target, weight=weight_full, reduction='mean'))
            check(f"{tag}/mean_lw",
                  MSELoss(loss_weight=0.5, reduction='mean')(pred, target),
                  _ref_mse_loss(pred, target, reduction='mean', loss_weight=0.5))

    keys = jax.random.split(jax.random.PRNGKey(0), 4)

    # Standard NCHW shape: no-copy reshapes + compact-weight fast paths.
    run_suite("base", (2, 4, 16, 16), keys[0])

    # numel not a multiple of 128 -> padded fallback + broadcast-weight fallback.
    run_suite("oddsize", (2, 3, 10, 10), keys[1])

    # Stress multi-tile grids, the 2-way core split, boundary gating, the
    # clamped-duplicate skip, and channel packing with k < C, by shrinking the
    # tile cap and forcing the core split (pure perf knobs, correctness-safe).
    _SAVED = (_TM_CAP, _NCORES)
    _TM_CAP, _NCORES = 16, 2
    run_suite("tiles16", (2, 4, 16, 24), keys[2], full=False)
    run_suite("pack", (2, 8, 16, 32), keys[2], full=False)
    _TM_CAP, _NCORES = 8, 2
    run_suite("tiles8", (2, 4, 16, 24), keys[3], full=False)
    _TM_CAP, _NCORES = _SAVED

    if failures:
        print("KERNEL_MISMATCH: " + ", ".join(failures))
    else:
        print("KERNEL_OK")
</pallas_src>

<mosaic_0001>
module attributes {stable_mosaic.version = 11 : i64} {
  func.func @_sum_reduce_kernel(%arg0: i32, %arg1: i32, %arg2: memref<16x128xf32, #tpu.memory_space<vmem>>, %arg3: memref<16x128xf32, #tpu.memory_space<vmem>>, %arg4: memref<1x1x1xf32, #tpu.memory_space<vmem>>, %arg5: memref<8x128xf32, #tpu.memory_space<vmem>>) attributes {dimension_semantics = [#tpu.dimension_semantics<parallel>, #tpu.dimension_semantics<arbitrary>], iteration_bounds = array<i64: 1, 1>, scalar_prefetch = 0 : i64, scratch_operands = 1 : i64, tpu.core_type = #tpu.core_type<tc>, window_params = [{transform_indices = @transform_0, window_bounds = array<i64: 16, 128>}, {transform_indices = @transform_1, window_bounds = array<i64: 16, 128>}, {transform_indices = @transform_2, window_bounds = array<i64: 1, 1, 1>}]} {
    %c0_i32 = arith.constant 0 : i32
    %0 = arith.cmpi eq, %arg1, %c0_i32 : i32
    %1 = arith.extui %0 : i1 to i32
    %c0_i32_0 = arith.constant 0 : i32
    %2 = arith.cmpi ne, %1, %c0_i32_0 : i32
    scf.if %2 {
      %cst_10 = arith.constant 0.000000e+00 : f32
      %15 = vector.broadcast %cst_10 : f32 to vector<8x128xf32>
      %c0_11 = arith.constant 0 : index
      %c0_12 = arith.constant 0 : index
      %16 = vector.load %arg5[%c0_11, %c0_12] : memref<8x128xf32, #tpu.memory_space<vmem>>, vector<8x128xf32>
      tpu.vector_store %arg5[%c0_11, %c0_12], %15 {strides = array<i32>} : memref<8x128xf32, #tpu.memory_space<vmem>>, vector<8x128xf32>,
    } else {
    }
    %c0 = arith.constant 0 : index
    %c0_1 = arith.constant 0 : index
    %3 = vector.load %arg2[%c0, %c0_1] : memref<16x128xf32, #tpu.memory_space<vmem>>, vector<16x128xf32>
    %c0_2 = arith.constant 0 : index
    %c0_3 = arith.constant 0 : index
    %4 = vector.load %arg3[%c0_2, %c0_3] : memref<16x128xf32, #tpu.memory_space<vmem>>, vector<16x128xf32>
    %5 = arith.subf %3, %4 : vector<16x128xf32>
    %6 = arith.mulf %5, %5 : vector<16x128xf32>
    %c0_4 = arith.constant 0 : index
    %c0_5 = arith.constant 0 : index
    %7 = vector.load %arg5[%c0_4, %c0_5] : memref<8x128xf32, #tpu.memory_space<vmem>>, vector<8x128xf32>
    %8 = vector.shape_cast %6 : vector<16x128xf32> to vector<2x8x128xf32>
    %cst = arith.constant dense<0.000000e+00> : vector<8x128xf32>
    %9 = vector.multi_reduction <add>, %8, %cst [0] : vector<2x8x128xf32> to vector<8x128xf32>
    %10 = arith.addf %7, %9 : vector<8x128xf32>
    %c0_6 = arith.constant 0 : index
    %c0_7 = arith.constant 0 : index
    %11 = vector.load %arg5[%c0_6, %c0_7] : memref<8x128xf32, #tpu.memory_space<vmem>>, vector<8x128xf32>
    tpu.vector_store %arg5[%c0_6, %c0_7], %10 {strides = array<i32>} : memref<8x128xf32, #tpu.memory_space<vmem>>, vector<8x128xf32>,
    %c0_i32_8 = arith.constant 0 : i32
    %12 = arith.cmpi eq, %arg1, %c0_i32_8 : i32
    %13 = arith.extui %12 : i1 to i32
    %c0_i32_9 = arith.constant 0 : i32
    %14 = arith.cmpi ne, %13, %c0_i32_9 : i32
    scf.if %14 {
      %c0_10 = arith.constant 0 : index
      %c0_11 = arith.constant 0 : index
      %15 = vector.load %arg5[%c0_10, %c0_11] : memref<8x128xf32, #tpu.memory_space<vmem>>, vector<8x128xf32>
      %16 = vector.shape_cast %15 : vector<8x128xf32> to vector<1x8x128xf32>
      %cst_12 = arith.constant dense<0.000000e+00> : vector<1xf32>
      %17 = vector.multi_reduction <add>, %16, %cst_12 [1, 2] : vector<1x8x128xf32> to vector<1xf32>
      %18 = vector.shape_cast %17 : vector<1xf32> to vector<1x1x1xf32>
      %19 = vector.extract %18[0, 0, 0] : f32 from vector<1x1x1xf32>
      %20 = vector.broadcast %19 : f32 to vector<1x1xf32>
      %c0_13 = arith.constant 0 : index
      %c0_14 = arith.constant 0 : index
      %c0_15 = arith.constant 0 : index
      %21 = vector.load %arg4[%c0_13, %c0_14, %c0_15] : memref<1x1x1xf32, #tpu.memory_space<vmem>>, vector<1x1x1xf32>
      %22 = vector.shape_cast %21 : vector<1x1x1xf32> to vector<1x1xf32>
      %23 = vector.shape_cast %20 : vector<1x1xf32> to vector<1x1x1xf32>
      tpu.vector_store %arg4[%c0_13, %c0_14, %c0_15], %23 {strides = array<i32>} : memref<1x1x1xf32, #tpu.memory_space<vmem>>, vector<1x1x1xf32>,
    } else {
    }
    return
  }
  func.func @transform_0(%arg0: i32, %arg1: i32) -> (i32, i32) {
    %c1_i32 = arith.constant 1 : i32
    %0 = arith.muli %arg0, %c1_i32 : i32
    %1 = arith.addi %0, %arg1 : i32
    %c0_i32 = arith.constant 0 : i32
    %2 = arith.minsi %1, %c0_i32 : i32
    %c0_i32_0 = arith.constant 0 : i32
    %c0_i32_1 = arith.constant 0 : i32
    return %2, %c0_i32_0 : i32, i32
  }
  func.func @transform_1(%arg0: i32, %arg1: i32) -> (i32, i32) {
    %c1_i32 = arith.constant 1 : i32
    %0 = arith.muli %arg0, %c1_i32 : i32
    %1 = arith.addi %0, %arg1 : i32
    %c0_i32 = arith.constant 0 : i32
    %2 = arith.minsi %1, %c0_i32 : i32
    %c0_i32_0 = arith.constant 0 : i32
    %c0_i32_1 = arith.constant 0 : i32
    return %2, %c0_i32_0 : i32, i32
  }
  func.func @transform_2(%arg0: i32, %arg1: i32) -> (i32, i32, i32) {
    %c0_i32 = arith.constant 0 : i32
    %c0_i32_0 = arith.constant 0 : i32
    %c0_i32_1 = arith.constant 0 : i32
    return %arg0, %c0_i32, %c0_i32_0 : i32, i32, i32
  }
}

</mosaic_0001>

<llo_original>
// kernel: tpu_custom_call.1
$region0: #{tpu_custom_call.1}
  #allocation0 [shape = 'u32[]', space=smem, size = 0x4, offset = 0x4, fixed_abs, tag = 'smem constant byte address 0x4 - core index']
  #allocation1 [shape = 'u32[72,128]{1,0:T(1,128)}', space=vmem, size = 0x9000, scoped, tag = 'internal scratch']
  #allocation2 [shape = 'f32[8,128]{1,0:T(8,128)}', space=vmem, size = 0x1000, scoped, tag = 'scratch operand']
  %s0 = inlined_call_operand.hbm [shape: f32[16,128], index: 0, kind: input, shape index: {}]
  %s1 = inlined_call_operand.hbm [shape: f32[16,128], index: 1, kind: input, shape index: {}]
  %s2 = inlined_call_operand.hbm [shape: f32[1,1,1], index: 2, kind: output, shape index: {}]
  %s3 = sld [smem:[#allocation0]]
  $region34: #{tpu_custom_call.1} parent=0
    _
  %s5 = ssub.s32 1, %s3
  %s6 = scalar_select 0, %s5, %s3
  $region1: #{tpu_custom_call.1} parent=0
    #allocation3 [shape = 'u8[8192]{0}', space=vmem, size = 0x2000, scoped, tag = 'input window, operand 0, single buffered']
    #allocation4 [shape = 's32[1]{0}', space=sflag, size = 0x4, scoped, tag = 'scoped memory for tpu_custom_call.1']
    #allocation5 [shape = 's32[1]{0}', space=sflag, size = 0x4, scoped, tag = 'scoped memory for tpu_custom_call.1']
    #allocation6 [shape = 'u8[8192]{0}', space=vmem, size = 0x2000, scoped, tag = 'input window, operand 1, single buffered']
    #allocation7 [shape = 's32[1]{0}', space=sflag, size = 0x4, scoped, tag = 'scoped memory for tpu_custom_call.1']
    #allocation8 [shape = 'u8[512]{0}', space=vmem, size = 0x400, scoped, tag = 'output window, operand 0, single buffered']
    %7 = vsyncpa [#allocation4], 0
    %8 = vsyncpa [#allocation7], 0
    %9 = vsyncpa [#allocation5], 0
    // Predicated region
    $region2: #{tpu_custom_call.1} parent=1 // pred_check
      _
    $region3: #{tpu_custom_call.1} parent=1 // pred_check_branch
      %11 = sbr.rel (0) target = $region5
    $region4: #{tpu_custom_call.1} parent=1 // pred_region
      %s12 = sadd.s32 0, 0
      %p13 = scmp.lt.s32.totalorder %s12, 0
      %s14 = scalar_select %p13, %s12, 0
      %s15 = smul.u32 2, %s14
      %17 = vsyncadd [#allocation4], 0
      %s18 = smul.addr %s15, 8
      %s19 = scalar_lea.hbm %s0, %s18
      %s20 = sshll.u32 %s19, 4
      %s21 = int_to_ptr.hbm [resolvable:$true] %s20
      %s22 = sshll.u32 [#allocation3], 4
      %s23 = int_to_ptr.vmem [resolvable:$true] %s22
      %28 = dma.hbm_to_vmem [thread:$0]  %s21, 256, %s23, [#allocation4], 128, 128, 8
    $region5: #{tpu_custom_call.1} parent=1 // pred_fallthru
      _
    // Predicated region
    $region6: #{tpu_custom_call.1} parent=1 // pred_check
      _
    $region7: #{tpu_custom_call.1} parent=1 // pred_check_branch
      %30 = sbr.rel (0) target = $region9
    $region8: #{tpu_custom_call.1} parent=1 // pred_region
      %s31 = sadd.s32 0, 0
      %p32 = scmp.lt.s32.totalorder %s31, 0
      %s33 = scalar_select %p32, %s31, 0
      %s34 = smul.u32 2, %s33
      %36 = vsyncadd [#allocation7], 0
      %s37 = smul.addr %s34, 8
      %s38 = scalar_lea.hbm %s1, %s37
      %s39 = sshll.u32 %s38, 4
      %s40 = int_to_ptr.hbm [resolvable:$true] %s39
      %s41 = sshll.u32 [#allocation6], 4
      %s42 = int_to_ptr.vmem [resolvable:$true] %s41
      %47 = dma.hbm_to_vmem [thread:$0]  %s40, 256, %s42, [#allocation7], 128, 128, 8
    $region9: #{tpu_custom_call.1} parent=1 // pred_fallthru
      _
    // Predicated region
    $region10: #{tpu_custom_call.1} parent=1 // pred_check
      _
    $region11: #{tpu_custom_call.1} parent=1 // pred_check_branch
      %49 = sbr.rel (0) target = $region13
    $region12: #{tpu_custom_call.1} parent=1 // pred_region
      %51 = dma.done [#allocation4], 256
    $region13: #{tpu_custom_call.1} parent=1 // pred_fallthru
      _
    // Predicated region
    $region14: #{tpu_custom_call.1} parent=1 // pred_check
      _
    $region15: #{tpu_custom_call.1} parent=1 // pred_check_branch
      %53 = sbr.rel (0) target = $region17
    $region16: #{tpu_custom_call.1} parent=1 // pred_region
      %55 = dma.done [#allocation7], 256
    $region17: #{tpu_custom_call.1} parent=1 // pred_fallthru
      _
    %s56 = sadd.s32 0, 0
    %p57 = scmp.lt.s32.totalorder %s56, 0
    %s58 = scalar_select %p57, %s56, 0
    %s59 = smul.u32 2, %s58
    %s60 = sadd.s32 0, 0
    %p61 = scmp.lt.s32.totalorder %s60, 0
    %s62 = scalar_select %p61, %s60, 0
    %s63 = smul.u32 2, %s62
    %p64 = scmp.eq.s32.totalorder 0, 0
    // Predicated region
    $region18: #{tpu_custom_call.1} parent=1 // pred_check
      %p65 = pneg %p64
    $region19: #{tpu_custom_call.1} parent=1 // pred_check_branch
      %67 = sbr.rel (%p65) target = $region21
    $region20: #{tpu_custom_call.1} parent=1 // pred_region
      %68 = vst [vmem:[#allocation2] sm:$0xff] 0.0
    $region21: #{tpu_custom_call.1} parent=1 // pred_fallthru
      _
    %v69 = vld [vmem:[#allocation3] sm:$0xff]
    %v70 = vld [vmem:[#allocation3 + $0x8] sm:$0xff]
    %v71 = vld [vmem:[#allocation6] sm:$0xff]
    %v72 = vld [vmem:[#allocation6 + $0x8] sm:$0xff]
    %v73 = vsub.f32 %v69, %v71
    %v74 = vsub.f32 %v70, %v72
    %v75 = vmul.f32 %v73, %v73
    %v76 = vmul.f32 %v74, %v74
    %v77 = vld [vmem:[#allocation2] sm:$0xff]
    %v78 = vadd.f32 %v75, %v76
    %v79 = vadd.f32 %v77, %v78
    %80 = vst [vmem:[#allocation2] sm:$0xff] %v79
    // Predicated region
    $region22: #{tpu_custom_call.1} parent=1 // pred_check
      %p81 = pneg %p64
    $region23: #{tpu_custom_call.1} parent=1 // pred_check_branch
      %83 = sbr.rel (%p81) target = $region25
    $region24: #{tpu_custom_call.1} parent=1 // pred_region
      %v84 = vld [vmem:[#allocation2] sm:$0xff]
      %85 = vadd.xlane.f32.xlu0 %v84
      %v86 = vpop.xlane.xlu0 %85
      %v87 = vrot.slane %v86, 4
      %v88 = vadd.f32 %v86, %v87
      %v89 = vrot.slane %v88, 2
      %v90 = vadd.f32 %v88, %v89
      %v91 = vrot.slane %v90, 1
      %v92 = vadd.f32 %v90, %v91
      %s93 = vtos %v92
      %v94 = vstv %s93
      %vm95 = vcmask 0
      %96 = vst.msk [vmem:[#allocation8] sm:$0x1] %vm95, %v94
    $region25: #{tpu_custom_call.1} parent=1 // pred_fallthru
      _
    // Predicated region
    $region26: #{tpu_custom_call.1} parent=1 // pred_check
      _
    $region27: #{tpu_custom_call.1} parent=1 // pred_check_branch
      %98 = sbr.rel (0) target = $region29
    $region28: #{tpu_custom_call.1} parent=1 // pred_region
      %100 = vsyncadd [#allocation5], 0
      %s102 = sshll.u32 [#allocation8], 4
      %s103 = int_to_ptr.vmem [resolvable:$true] %s102
      %s104 = sshll.u32 %s2, 4
      %s105 = int_to_ptr.hbm [resolvable:$true] %s104
      %107 = dma.vmem_to_hbm [thread:$0]  %s103, 16, %s105, [#allocation5]
    $region29: #{tpu_custom_call.1} parent=1 // pred_fallthru
      _
    // Predicated region
    $region30: #{tpu_custom_call.1} parent=1 // pred_check
      _
    $region31: #{tpu_custom_call.1} parent=1 // pred_check_branch
      %109 = sbr.rel (0) target = $region33
    $region32: #{tpu_custom_call.1} parent=1 // pred_region
      %111 = dma.done [#allocation5], 16
    $region33: #{tpu_custom_call.1} parent=1 // pred_fallthru
      _
    %112 = vsyncpa [#allocation4], 1
    %113 = vsyncpa [#allocation7], 1
    %114 = vsyncpa [#allocation5], 1

</llo_original>
